<compile_context>
chip_gen: v7x
topology: tpu7x:2x2x1
jax: 0.10.0
libtpu: 0.0.40
codegen_flags: <defaults>
</compile_context>

<pallas_src>
import jax
import jax.numpy as jnp
from jax import lax
from jax.experimental import pallas as pl
from jax.experimental.pallas import tpu as pltpu

LN_EPS = 1e-5  # PyTorch nn.LayerNorm default eps


def _round_up(n, m):
    return -(-n // m) * m


# ---------------------------------------------------------------------------
# Fused DenseBlock kernel: y = relu(layernorm(x @ W^T + b) * gamma + beta)
#   x_ref:    (TB, Din)
#   w_ref:    (Din, Dout)   (pre-transposed Linear weight)
#   b_ref:    (1, Dout)
#   g_ref:    (1, Dout)     (LayerNorm weight)
#   beta_ref: (1, Dout)     (LayerNorm bias)
#   o_ref:    (TB, Dout)
# ---------------------------------------------------------------------------
def _dense_block_kernel(x_ref, w_ref, b_ref, g_ref, beta_ref, o_ref):
    # Linear (MXU, f32 accumulate, default precision per perf review).
    y = jnp.dot(x_ref[...], w_ref[...], preferred_element_type=jnp.float32) + b_ref[...]
    # LayerNorm over the last (feature) axis.
    mean = jnp.mean(y, axis=-1, keepdims=True)
    cent = y - mean
    var = jnp.mean(cent * cent, axis=-1, keepdims=True)
    y_n = cent * lax.rsqrt(var + LN_EPS)
    y_aff = y_n * g_ref[...] + beta_ref[...]
    # ReLU; Dropout is identity at inference.
    o_ref[...] = jnp.maximum(y_aff, 0.0).astype(o_ref.dtype)


def dense_block_forward(x, params):
    """x: (..., in_features) -> (..., out_features), fused in one pallas_call."""
    w = jnp.asarray(params["w"], jnp.float32)        # (out, in) PyTorch layout
    b = jnp.asarray(params["b"], jnp.float32)        # (out,)
    gamma = jnp.asarray(params["gamma"], jnp.float32)
    beta = jnp.asarray(params["beta"], jnp.float32)
    d_out, d_in = w.shape

    lead = x.shape[:-1]
    x2 = jnp.asarray(x, jnp.float32).reshape(-1, d_in)
    rows = x2.shape[0]

    # Pad the row (batch) axis to a sublane-dense multiple of 8 and pick the
    # largest batch tile up to 128 (rows of padded zeros are harmless through
    # LayerNorm/ReLU and are sliced off afterwards).
    rows8 = _round_up(max(rows, 1), 8)
    block_b = min(128, rows8)
    rows_p = _round_up(rows8, block_b)
    if rows_p != rows:
        x2 = jnp.pad(x2, ((0, rows_p - rows), (0, 0)))

    out = pl.pallas_call(
        _dense_block_kernel,
        out_shape=jax.ShapeDtypeStruct((rows_p, d_out), jnp.float32),
        grid=(rows_p // block_b,),
        in_specs=[
            pl.BlockSpec((block_b, d_in), lambda i: (i, 0)),
            pl.BlockSpec((d_in, d_out), lambda i: (0, 0)),
            pl.BlockSpec((1, d_out), lambda i: (0, 0)),
            pl.BlockSpec((1, d_out), lambda i: (0, 0)),
            pl.BlockSpec((1, d_out), lambda i: (0, 0)),
        ],
        out_specs=pl.BlockSpec((block_b, d_out), lambda i: (i, 0)),
        compiler_params=pltpu.CompilerParams(
            dimension_semantics=("parallel",)),
    )(x2, w.T, b.reshape(1, d_out), gamma.reshape(1, d_out), beta.reshape(1, d_out))

    return out[:rows].reshape(lead + (d_out,))


# ---------------------------------------------------------------------------
# Pure-JAX reference (exact f32 math) for verification
# ---------------------------------------------------------------------------
def reference_forward(x, params):
    w, b = params["w"], params["b"]
    gamma, beta = params["gamma"], params["beta"]
    y = jnp.dot(x, w.T, precision=lax.Precision.HIGHEST) + b
    mean = y.mean(axis=-1, keepdims=True)
    var = ((y - mean) ** 2).mean(axis=-1, keepdims=True)
    y = (y - mean) / jnp.sqrt(var + LN_EPS)
    y = y * gamma + beta
    return jnp.maximum(y, 0.0)  # dropout == identity in eval mode


if __name__ == "__main__":
    # Small shapes consistent with the module: x (batch=2, seq=8, in_channels=32),
    # out_channels=128 (lane-dense), dropout_rate=0.1 (identity at inference).
    B, T, D_IN, D_OUT = 2, 8, 32, 128

    key = jax.random.PRNGKey(0)
    k_x, k_w, k_b, k_g, k_beta = jax.random.split(key, 5)

    x = jax.random.normal(k_x, (B, T, D_IN), dtype=jnp.float32)

    scale = 1.0 / float(jnp.sqrt(D_IN))
    params = {
        # nn.Linear(in_channels, out_channels): weight (out, in), bias (out,)
        "w": jax.random.uniform(k_w, (D_OUT, D_IN), minval=-scale, maxval=scale,
                                dtype=jnp.float32),
        "b": jax.random.uniform(k_b, (D_OUT,), minval=-scale, maxval=scale,
                                dtype=jnp.float32),
        # nn.LayerNorm(out_channels) affine params (perturbed from 1/0 to
        # exercise the affine path; PyTorch default init is ones/zeros).
        "gamma": 1.0 + 0.1 * jax.random.normal(k_g, (D_OUT,), dtype=jnp.float32),
        "beta": 0.1 * jax.random.normal(k_beta, (D_OUT,), dtype=jnp.float32),
    }

    out = jax.block_until_ready(dense_block_forward(x, params))
    ref = jax.block_until_ready(reference_forward(x, params))

    assert out.shape == (B, T, D_OUT), out.shape
    # Default-precision MXU matmul (perf review) -> loosened tolerance vs exact-f32 ref.
    max_err = float(jnp.max(jnp.abs(out - ref)))
    assert jnp.allclose(out, ref, rtol=2e-2, atol=2e-2), max_err
    print("KERNEL_OK")
</pallas_src>

<mosaic_0001>
module attributes {stable_mosaic.version = 11 : i64} {
  func.func @_dense_block_kernel(%arg0: i32, %arg1: memref<16x32xf32, #tpu.memory_space<vmem>>, %arg2: memref<32x128xf32, #tpu.memory_space<vmem>>, %arg3: memref<1x128xf32, #tpu.memory_space<vmem>>, %arg4: memref<1x128xf32, #tpu.memory_space<vmem>>, %arg5: memref<1x128xf32, #tpu.memory_space<vmem>>, %arg6: memref<16x128xf32, #tpu.memory_space<vmem>>) attributes {dimension_semantics = [#tpu.dimension_semantics<parallel>], iteration_bounds = array<i64: 1>, scalar_prefetch = 0 : i64, scratch_operands = 0 : i64, tpu.core_type = #tpu.core_type<tc>, window_params = [{transform_indices = @transform_0, window_bounds = array<i64: 16, 32>}, {pipeline_mode = #tpu.pipeline_mode<synchronous>, transform_indices = @transform_1, window_bounds = array<i64: 32, 128>}, {pipeline_mode = #tpu.pipeline_mode<synchronous>, transform_indices = @transform_2, window_bounds = array<i64: 1, 128>}, {pipeline_mode = #tpu.pipeline_mode<synchronous>, transform_indices = @transform_3, window_bounds = array<i64: 1, 128>}, {pipeline_mode = #tpu.pipeline_mode<synchronous>, transform_indices = @transform_4, window_bounds = array<i64: 1, 128>}, {transform_indices = @transform_5, window_bounds = array<i64: 16, 128>}]} {
    %c0 = arith.constant 0 : index
    %c0_0 = arith.constant 0 : index
    %0 = vector.load %arg1[%c0, %c0_0] : memref<16x32xf32, #tpu.memory_space<vmem>>, vector<16x32xf32>
    %c0_1 = arith.constant 0 : index
    %c0_2 = arith.constant 0 : index
    %1 = vector.load %arg2[%c0_1, %c0_2] : memref<32x128xf32, #tpu.memory_space<vmem>>, vector<32x128xf32>
    %cst = arith.constant dense<0.000000e+00> : vector<16x128xf32>
    %2 = tpu.matmul %0, %1, %cst {dimension_numbers = #tpu.dot_dimension_numbers<[1], [0], [0], [1], [0, 0, 1, 1], [], []>} : vector<16x32xf32>, vector<32x128xf32>, vector<16x128xf32> -> vector<16x128xf32>
    %c0_3 = arith.constant 0 : index
    %c0_4 = arith.constant 0 : index
    %3 = vector.load %arg3[%c0_3, %c0_4] : memref<1x128xf32, #tpu.memory_space<vmem>>, vector<1x128xf32>
    %4 = vector.broadcast %3 : vector<1x128xf32> to vector<16x128xf32>
    %5 = arith.addf %2, %4 : vector<16x128xf32>
    %cst_5 = arith.constant dense<0.000000e+00> : vector<16xf32>
    %6 = vector.multi_reduction <add>, %5, %cst_5 [1] : vector<16x128xf32> to vector<16xf32>
    %7 = vector.shape_cast %6 : vector<16xf32> to vector<16x1xf32>
    %cst_6 = arith.constant 1.280000e+02 : f32
    %8 = vector.broadcast %cst_6 : f32 to vector<16x1xf32>
    %9 = arith.divf %7, %8 : vector<16x1xf32>
    %10 = vector.broadcast %9 : vector<16x1xf32> to vector<16x128xf32>
    %11 = arith.subf %5, %10 : vector<16x128xf32>
    %12 = arith.mulf %11, %11 : vector<16x128xf32>
    %cst_7 = arith.constant dense<0.000000e+00> : vector<16xf32>
    %13 = vector.multi_reduction <add>, %12, %cst_7 [1] : vector<16x128xf32> to vector<16xf32>
    %14 = vector.shape_cast %13 : vector<16xf32> to vector<16x1xf32>
    %cst_8 = arith.constant 1.280000e+02 : f32
    %15 = vector.broadcast %cst_8 : f32 to vector<16x1xf32>
    %16 = arith.divf %14, %15 : vector<16x1xf32>
    %cst_9 = arith.constant 9.99999974E-6 : f32
    %17 = vector.broadcast %cst_9 : f32 to vector<16x1xf32>
    %18 = arith.addf %16, %17 : vector<16x1xf32>
    %19 = math.rsqrt %18 : vector<16x1xf32>
    %20 = vector.broadcast %19 : vector<16x1xf32> to vector<16x128xf32>
    %21 = arith.mulf %11, %20 : vector<16x128xf32>
    %c0_10 = arith.constant 0 : index
    %c0_11 = arith.constant 0 : index
    %22 = vector.load %arg4[%c0_10, %c0_11] : memref<1x128xf32, #tpu.memory_space<vmem>>, vector<1x128xf32>
    %23 = vector.broadcast %22 : vector<1x128xf32> to vector<16x128xf32>
    %24 = arith.mulf %21, %23 : vector<16x128xf32>
    %c0_12 = arith.constant 0 : index
    %c0_13 = arith.constant 0 : index
    %25 = vector.load %arg5[%c0_12, %c0_13] : memref<1x128xf32, #tpu.memory_space<vmem>>, vector<1x128xf32>
    %26 = vector.broadcast %25 : vector<1x128xf32> to vector<16x128xf32>
    %27 = arith.addf %24, %26 : vector<16x128xf32>
    %cst_14 = arith.constant 0.000000e+00 : f32
    %28 = vector.broadcast %cst_14 : f32 to vector<16x128xf32>
    %29 = arith.maximumf %27, %28 : vector<16x128xf32>
    %c0_15 = arith.constant 0 : index
    %c0_16 = arith.constant 0 : index
    %30 = vector.load %arg6[%c0_15, %c0_16] : memref<16x128xf32, #tpu.memory_space<vmem>>, vector<16x128xf32>
    tpu.vector_store %arg6[%c0_15, %c0_16], %29 {strides = array<i32>} : memref<16x128xf32, #tpu.memory_space<vmem>>, vector<16x128xf32>,
    return
  }
  func.func @transform_0(%arg0: i32) -> (i32, i32) {
    %c0_i32 = arith.constant 0 : i32
    %c0_i32_0 = arith.constant 0 : i32
    return %arg0, %c0_i32 : i32, i32
  }
  func.func @transform_1(%arg0: i32) -> (i32, i32) {
    %c0_i32 = arith.constant 0 : i32
    %c0_i32_0 = arith.constant 0 : i32
    %c0_i32_1 = arith.constant 0 : i32
    return %c0_i32, %c0_i32_0 : i32, i32
  }
  func.func @transform_2(%arg0: i32) -> (i32, i32) {
    %c0_i32 = arith.constant 0 : i32
    %c0_i32_0 = arith.constant 0 : i32
    %c0_i32_1 = arith.constant 0 : i32
    return %c0_i32, %c0_i32_0 : i32, i32
  }
  func.func @transform_3(%arg0: i32) -> (i32, i32) {
    %c0_i32 = arith.constant 0 : i32
    %c0_i32_0 = arith.constant 0 : i32
    %c0_i32_1 = arith.constant 0 : i32
    return %c0_i32, %c0_i32_0 : i32, i32
  }
  func.func @transform_4(%arg0: i32) -> (i32, i32) {
    %c0_i32 = arith.constant 0 : i32
    %c0_i32_0 = arith.constant 0 : i32
    %c0_i32_1 = arith.constant 0 : i32
    return %c0_i32, %c0_i32_0 : i32, i32
  }
  func.func @transform_5(%arg0: i32) -> (i32, i32) {
    %c0_i32 = arith.constant 0 : i32
    %c0_i32_0 = arith.constant 0 : i32
    return %arg0, %c0_i32 : i32, i32
  }
}

</mosaic_0001>

<llo_original>
// kernel: tpu_custom_call.1
$region0: #{tpu_custom_call.1}
  #allocation0 [shape = 'u32[]', space=smem, size = 0x4, offset = 0x4, fixed_abs, tag = 'smem constant byte address 0x4 - core index']
  #allocation1 [shape = 'u32[144,128]{1,0:T(1,128)}', space=vmem, size = 0x12000, scoped, tag = 'internal scratch']
  %s0 = inlined_call_operand.hbm [shape: f32[16,32], index: 0, kind: input, shape index: {}]
  %s1 = inlined_call_operand.hbm [shape: f32[32,128], index: 1, kind: input, shape index: {}]
  %s2 = inlined_call_operand.vmem [shape: f32[1,128], index: 2, kind: input, shape index: {}]
  %s3 = inlined_call_operand.vmem [shape: f32[1,128], index: 3, kind: input, shape index: {}]
  %s4 = inlined_call_operand.vmem [shape: f32[1,128], index: 4, kind: input, shape index: {}]
  %s5 = inlined_call_operand.hbm [shape: f32[16,128], index: 5, kind: output, shape index: {}]
  %s6 = sld [smem:[#allocation0]]
  $region38: #{tpu_custom_call.1} parent=0
    _
  %s8 = ssub.s32 1, %s6
  %s9 = scalar_select 0, %s8, %s6
  $region1: #{tpu_custom_call.1} parent=0
    #allocation2 [shape = 'u8[8192]{0}', space=vmem, size = 0x2000, scoped, tag = 'input window, operand 0, single buffered']
    #allocation3 [shape = 's32[1]{0}', space=sflag, size = 0x4, scoped, tag = 'scoped memory for tpu_custom_call.1']
    #allocation4 [shape = 's32[1]{0}', space=sflag, size = 0x4, scoped, tag = 'scoped memory for tpu_custom_call.1']
    #allocation5 [shape = 'u8[16384]{0}', space=vmem, size = 0x4000, scoped, tag = 'input window, operand 1, single buffered']
    #allocation6 [shape = 's32[1]{0}', space=sflag, size = 0x4, scoped, tag = 'scoped memory for tpu_custom_call.1']
    #allocation7 [shape = 'u8[8192]{0}', space=vmem, size = 0x2000, scoped, tag = 'output window, operand 0, single buffered']
    %10 = vsyncpa [#allocation3], 0
    %11 = vsyncpa [#allocation6], 0
    %12 = vsyncpa [#allocation4], 0
    // Predicated region
    $region2: #{tpu_custom_call.1} parent=1 // pred_check
      _
    $region3: #{tpu_custom_call.1} parent=1 // pred_check_branch
      %14 = sbr.rel (0) target = $region5
    $region4: #{tpu_custom_call.1} parent=1 // pred_region
      %s16 = ssub.s32 256, 256
      %17 = vsyncadd [#allocation3], %s16
      %s18 = sshll.u32 [#allocation2], 4
      %s19 = int_to_ptr.vmem [resolvable:$true] %s18
      %24 = dma.hbm_to_vmem [thread:$0]  %s0, 256, %s19, [#allocation3], 128, 128, 8
    $region5: #{tpu_custom_call.1} parent=1 // pred_fallthru
      _
    // Predicated region
    $region6: #{tpu_custom_call.1} parent=1 // pred_check
      _
    $region7: #{tpu_custom_call.1} parent=1 // pred_check_branch
      %26 = sbr.rel (0) target = $region9
    $region8: #{tpu_custom_call.1} parent=1 // pred_region
      %s28 = ssub.s32 512, 512
      %29 = vsyncadd [#allocation6], %s28
      %s30 = sshll.u32 [#allocation5], 4
      %s31 = int_to_ptr.vmem [resolvable:$true] %s30
      %36 = dma.hbm_to_vmem [thread:$0]  %s1, 512, %s31, [#allocation6], 128, 128, 8
    $region9: #{tpu_custom_call.1} parent=1 // pred_fallthru
      _
    // Predicated region
    $region10: #{tpu_custom_call.1} parent=1 // pred_check
      _
    $region11: #{tpu_custom_call.1} parent=1 // pred_check_branch
      %38 = sbr.rel (0) target = $region13
    $region12: #{tpu_custom_call.1} parent=1 // pred_region
      _
    $region13: #{tpu_custom_call.1} parent=1 // pred_fallthru
      _
    // Predicated region
    $region14: #{tpu_custom_call.1} parent=1 // pred_check
      _
    $region15: #{tpu_custom_call.1} parent=1 // pred_check_branch
      %40 = sbr.rel (0) target = $region17
    $region16: #{tpu_custom_call.1} parent=1 // pred_region
      _
    $region17: #{tpu_custom_call.1} parent=1 // pred_fallthru
      _
    // Predicated region
    $region18: #{tpu_custom_call.1} parent=1 // pred_check
      _
    $region19: #{tpu_custom_call.1} parent=1 // pred_check_branch
      %42 = sbr.rel (0) target = $region21
    $region20: #{tpu_custom_call.1} parent=1 // pred_region
      _
    $region21: #{tpu_custom_call.1} parent=1 // pred_fallthru
      _
    // Predicated region
    $region22: #{tpu_custom_call.1} parent=1 // pred_check
      _
    $region23: #{tpu_custom_call.1} parent=1 // pred_check_branch
      %44 = sbr.rel (0) target = $region25
    $region24: #{tpu_custom_call.1} parent=1 // pred_region
      %45 = dma.done [#allocation3], 256
    $region25: #{tpu_custom_call.1} parent=1 // pred_fallthru
      _
    // Predicated region
    $region26: #{tpu_custom_call.1} parent=1 // pred_check
      _
    $region27: #{tpu_custom_call.1} parent=1 // pred_check_branch
      %47 = sbr.rel (0) target = $region29
    $region28: #{tpu_custom_call.1} parent=1 // pred_region
      %48 = dma.done [#allocation6], 512
    $region29: #{tpu_custom_call.1} parent=1 // pred_fallthru
      _
    %v49 = vld [vmem:[#allocation2] sm:$0xff]
    %v50 = vld [vmem:[#allocation2 + $0x8] sm:$0xff]
    %v51 = vld [vmem:[#allocation5] sm:$0xff]
    %v52 = vld [vmem:[#allocation5 + $0x8] sm:$0xff]
    %v53 = vld [vmem:[#allocation5 + $0x10] sm:$0xff]
    %v54 = vld [vmem:[#allocation5 + $0x18] sm:$0xff]
    %v55 = vld [vmem:[%s2] sm:$0x1]
    %v57 = vlaneseq
    %v58 = vshrl.u32 %v57, 7
    %v59 = vsub.s32 0, %v58
    %v60 = vrot.slane %v55, %v59
    %vm62 = vcmask 261120
    %v64 = vsel %vm62, %v49, 0
    %v67 = vsel %vm62, %v50, 0
    %69 = vmatprep.subr.mxu0 0.0
    %70 = vmatpush1.msra.mxu0 %v51
    %71 = vmatprep.subr.mxu0 0.0
    %72 = vmatpush1.msra.mxu0 %v52
    %73 = vmatprep.subr.mxu0 0.0
    %74 = vmatpush1.msra.mxu0 %v53
    %75 = vmatprep.subr.mxu0 0.0
    %76 = vmatpush1.msra.mxu0 %v54
    %77 = vmatprep.subr.mxu0 0.0
    %78 = vmatpush1.msra.mxu0 0.0
    %79 = vmatprep.subr.mxu0 0.0
    %80 = vmatpush1.msra.mxu0 0.0
    %81 = vmatprep.subr.mxu0 0.0
    %82 = vmatpush1.msra.mxu0 0.0
    %83 = vmatprep.subr.mxu0 0.0
    %84 = vmatpush1.msra.mxu0 0.0
    %85 = vmatprep.subr.mxu0 0.0
    %86 = vmatpush1.msra.mxu0 0.0
    %87 = vmatprep.subr.mxu0 0.0
    %88 = vmatpush1.msra.mxu0 0.0
    %89 = vmatprep.subr.mxu0 0.0
    %90 = vmatpush1.msra.mxu0 0.0
    %91 = vmatprep.subr.mxu0 0.0
    %92 = vmatpush1.msra.mxu0 0.0
    %93 = vmatprep.subr.mxu0 0.0
    %94 = vmatpush1.msra.mxu0 0.0
    %95 = vmatprep.subr.mxu0 0.0
    %96 = vmatpush1.msra.mxu0 0.0
    %97 = vmatprep.subr.mxu0 0.0
    %98 = vmatpush1.msra.mxu0 0.0
    %99 = vmatprep.subr.mxu0 0.0
    %100 = vmatpush1.msra.mxu0 0.0
    %101 = vmatprep.subr.mxu0 0.0
    %102 = vmatpush1.msra.mxu0 0.0
    %103 = vmatprep.subr.mxu0 0.0
    %104 = vmatpush1.msra.mxu0 0.0
    %105 = vmatprep.subr.mxu0 0.0
    %106 = vmatpush1.msra.mxu0 0.0
    %107 = vmatprep.subr.mxu0 0.0
    %108 = vmatpush1.msra.mxu0 0.0
    %109 = vmatprep.subr.mxu0 0.0
    %110 = vmatpush1.msra.mxu0 0.0
    %111 = vmatprep.subr.mxu0 0.0
    %112 = vmatpush1.msra.mxu0 0.0
    %113 = vmatprep.subr.mxu0 0.0
    %114 = vmatpush1.msra.mxu0 0.0
    %115 = vmatprep.subr.mxu0 0.0
    %116 = vmatpush1.msra.mxu0 0.0
    %117 = vmatprep.subr.mxu0 0.0
    %118 = vmatpush1.msra.mxu0 0.0
    %119 = vmatprep.subr.mxu0 0.0
    %120 = vmatpush1.msra.mxu0 0.0
    %121 = vmatprep.subr.mxu0 0.0
    %122 = vmatpush1.msra.mxu0 0.0
    %123 = vmatprep.subr.mxu0 0.0
    %124 = vmatpush1.msra.mxu0 0.0
    %125 = vmatprep.subr.mxu0 0.0
    %126 = vmatpush1.msra.mxu0 0.0
    %127 = vmatprep.subr.mxu0 0.0
    %128 = vmatpush1.msra.mxu0 0.0
    %129 = vmatprep.subr.mxu0 0.0
    %130 = vmatpush1.msra.mxu0 0.0
    %131 = vmatprep.subr.mxu0 0.0
    %132 = vmatpush1.msra.mxu0 0.0
    %133 = vmatprep.mubr.f32.mxu0 0.0
    %134 = vmatmul.mubr.f32.gmra.mrb[0].mxu0 %v64
    %v135 = vpop.f32.mrb[0].mxu0
    %v136 = vadd.f32 %v60, %v135
    %v137 = vpop.f32.mrb[0].mxu0
    %138 = vmatprep.mubr.f32.mxu0 0.0
    %139 = vmatmul.mubr.f32.gmra.mrb[0].mxu0 %v67
    %v140 = vpop.f32.mrb[0].mxu0
    %v141 = vadd.f32 %v60, %v140
    %v142 = vpop.f32.mrb[0].mxu0
    %143 = vdwg.mxu0
    %144 = vadd.xlane.f32.xlu0 %v136
    %v145 = vpop.xlane.xlu0 %144
    %146 = vadd.xlane.f32.xlu0 %v141
    %v147 = vpop.xlane.xlu0 %146
    %v148 = vrcp.pop 128.0
    %v149 = vmul.f32 %v145, %v148
    %v150 = vmul.f32 %v147, %v148
    %v151 = vsub.f32 %v136, %v149
    %v152 = vsub.f32 %v141, %v150
    %v153 = vmul.f32 %v151, %v151
    %v154 = vmul.f32 %v152, %v152
    %155 = vadd.xlane.f32.xlu0 %v153
    %v156 = vpop.xlane.xlu0 %155
    %157 = vadd.xlane.f32.xlu0 %v154
    %v158 = vpop.xlane.xlu0 %157
    %v159 = vmul.f32 %v156, %v148
    %v160 = vmul.f32 %v158, %v148
    %v161 = vadd.f32 %v159, 1e-05
    %v162 = vadd.f32 %v160, 1e-05
    %v163 = vrsqrt.pop %v161
    %v164 = vrsqrt.pop %v162
    %v165 = vmul.f32 %v151, %v163
    %v166 = vmul.f32 %v152, %v164
    %v167 = vld [vmem:[%s3] sm:$0x1]
    %v169 = vlaneseq
    %v170 = vshrl.u32 %v169, 7
    %v171 = vsub.s32 0, %v170
    %v172 = vrot.slane %v167, %v171
    %v174 = vmul.f32 %v165, %v172
    %v175 = vmul.f32 %v166, %v172
    %v176 = vld [vmem:[%s4] sm:$0x1]
    %v178 = vlaneseq
    %v179 = vshrl.u32 %v178, 7
    %v180 = vsub.s32 0, %v179
    %v181 = vrot.slane %v176, %v180
    %v183 = vadd.f32 %v174, %v181
    %v184 = vadd.f32 %v175, %v181
    %v185 = vmax.f32 %v183, 0.0
    %v186 = vmax.f32 %v184, 0.0
    %187 = vst [vmem:[#allocation7] sm:$0xff] %v185
    %188 = vst [vmem:[#allocation7 + $0x8] sm:$0xff] %v186
    // Predicated region
    $region30: #{tpu_custom_call.1} parent=1 // pred_check
      _
    $region31: #{tpu_custom_call.1} parent=1 // pred_check_branch
      %190 = sbr.rel (0) target = $region33
    $region32: #{tpu_custom_call.1} parent=1 // pred_region
      %s192 = ssub.s32 256, 256
      %193 = vsyncadd [#allocation4], %s192
      %s194 = sshll.u32 [#allocation7], 4
      %s195 = int_to_ptr.vmem [resolvable:$true] %s194
      %200 = dma.vmem_to_hbm [thread:$0]  %s195, 256, %s5, [#allocation4], 128, 128, 8
    $region33: #{tpu_custom_call.1} parent=1 // pred_fallthru
      _
    // Predicated region
    $region34: #{tpu_custom_call.1} parent=1 // pred_check
      _
    $region35: #{tpu_custom_call.1} parent=1 // pred_check_branch
      %202 = sbr.rel (0) target = $region37
    $region36: #{tpu_custom_call.1} parent=1 // pred_region
      %203 = dma.done [#allocation4], 256
    $region37: #{tpu_custom_call.1} parent=1 // pred_fallthru
      _
    %204 = vsyncpa [#allocation3], 1
    %205 = vsyncpa [#allocation6], 1
    %206 = vsyncpa [#allocation4], 1

</llo_original>
